<compile_context>
chip_gen: v7x
topology: tpu7x:2x2x1
jax: 0.10.0
libtpu: 0.0.40
codegen_flags: <defaults>
</compile_context>

<pallas_src>
import jax
import jax.numpy as jnp
from jax.experimental import pallas as pl
from jax.experimental.pallas import tpu as pltpu


def _dsam_kernel(xh_ref, xl_ref, w_ref, b_ref, e_ref, o_ref):
    # xh_ref : (1, C, ts)    half-res x_high spatial tile (whole rows)
    # xl_ref : (1, C, 4*ts)  matching full-res x_low spatial tile
    # w_ref  : (C, C)        conv1x1 weight with BN scale folded in
    # b_ref  : (C, 1)        folded BN bias (per output channel)
    # e_ref  : (ts, 4*ts)    one-hot nearest-neighbour 2x expansion matrix
    # o_ref  : (1, C, 4*ts)
    xh = xh_ref[0].astype(jnp.float32)                          # (C, ts)
    y = jnp.dot(w_ref[...], xh, preferred_element_type=jnp.float32)
    y = jnp.maximum(y + b_ref[...], 0.0)                        # BN bias + ReLU
    # nearest 2x2 upsample fused as an (exact, one-hot) matmul on the MXU
    y_up = jnp.dot(y, e_ref[...], preferred_element_type=jnp.float32)
    o_ref[0] = (xl_ref[0].astype(jnp.float32) + y_up).astype(o_ref.dtype)


def _pick_tile_rows(Hh, Wh, C, itemsize, vmem_budget=20 * 1024 * 1024):
    """Largest divisor kh of Hh s.t. the spatial tile ts = kh*Wh is
    (8,128)-legal (ts % 128 == 0 or ts == Hh*Wh) and the double-buffered
    working set fits the VMEM budget."""
    Sh = Hh * Wh
    smallest_valid = Hh
    for kh in range(Hh, 0, -1):
        if Hh % kh:
            continue
        ts = kh * Wh
        if ts != Sh and ts % 128 != 0:
            continue
        smallest_valid = kh
        xh_b = C * ts * itemsize
        xl_b = C * 4 * ts * itemsize            # x_low block == out block size
        e_b = ts * 4 * ts * 4
        w_b = C * C * 4 + C * 4
        if 2 * (xh_b + 2 * xl_b + e_b + w_b) <= vmem_budget:
            return kh
    return smallest_valid


def dsam_forward(x_low, x_high, conv_w, gamma, beta, run_mean, run_var,
                 eps=1e-5):
    """x_low: (N, C, H, W), x_high: (N, C, H//2, W//2) -> (N, C, H, W)."""
    N, C, H, W = x_low.shape
    Nh, Ch, Hh, Wh = x_high.shape
    assert (Nh, Ch) == (N, C) and H == 2 * Hh and W == 2 * Wh

    # ---- fold eval-mode BN into the 1x1 conv:  y = w_fold @ x + b_fold ------
    scale = (gamma / jnp.sqrt(run_var + eps)).astype(jnp.float32)        # (C,)
    w_fold = conv_w[:, :, 0, 0].astype(jnp.float32) * scale[:, None]     # (Co,Ci)
    b_fold = (beta.astype(jnp.float32)
              - run_mean.astype(jnp.float32) * scale).reshape(C, 1)

    # ---- free layout-preserving reshapes: NCHW -> (N, C, spatial) -----------
    Sh, S = Hh * Wh, H * W
    xh = x_high.reshape(N, C, Sh)
    xl = x_low.reshape(N, C, S)

    itemsize = jnp.dtype(x_low.dtype).itemsize
    kh = _pick_tile_rows(Hh, Wh, C, itemsize)   # half-res rows per grid step
    ts = kh * Wh                                # half-res spatial per tile
    n_row_blocks = Hh // kh                     # exact, no padding

    # one-hot nearest-neighbour expansion: half-res flat (ts,) -> full (4*ts,)
    q = jnp.arange(4 * ts)
    src = (q // W) // 2 * Wh + (q % W) // 2
    E = (src[None, :] == jnp.arange(ts)[:, None]).astype(jnp.float32)

    flops = 2 * N * C * C * Sh + 8 * N * C * Sh * ts
    bytes_accessed = (N * C * Sh + 2 * N * C * S) * itemsize \
        + (C * C + C + ts * 4 * ts) * 4

    out = pl.pallas_call(
        _dsam_kernel,
        out_shape=jax.ShapeDtypeStruct((N, C, S), x_low.dtype),
        grid=(N, n_row_blocks),
        in_specs=[
            pl.BlockSpec((1, C, ts), lambda n, j: (n, 0, j)),       # x_high
            pl.BlockSpec((1, C, 4 * ts), lambda n, j: (n, 0, j)),   # x_low
            pl.BlockSpec((C, C), lambda n, j: (0, 0)),              # weight
            pl.BlockSpec((C, 1), lambda n, j: (0, 0)),              # bias
            pl.BlockSpec((ts, 4 * ts), lambda n, j: (0, 0)),        # expansion
        ],
        out_specs=pl.BlockSpec((1, C, 4 * ts), lambda n, j: (n, 0, j)),
        compiler_params=pltpu.CompilerParams(
            dimension_semantics=("parallel", "parallel"),
            vmem_limit_bytes=32 * 1024 * 1024),
        cost_estimate=pl.CostEstimate(flops=flops, transcendentals=0,
                                      bytes_accessed=bytes_accessed),
    )(xh, xl, w_fold, b_fold, E)

    return out.reshape(N, C, H, W)


def _reference(x_low, x_high, conv_w, gamma, beta, run_mean, run_var, eps=1e-5):
    xh_up = jnp.repeat(jnp.repeat(x_high, 2, axis=2), 2, axis=3)
    y = jnp.einsum('oi,nihw->nohw', conv_w[:, :, 0, 0], xh_up)
    y = (y - run_mean[None, :, None, None]) / jnp.sqrt(
        run_var[None, :, None, None] + eps)
    y = y * gamma[None, :, None, None] + beta[None, :, None, None]
    y = jnp.maximum(y, 0.0)
    return x_low + y


if __name__ == "__main__":
    key = jax.random.PRNGKey(0)
    N, C, H, W = 2, 4, 16, 16            # x_low at target resolution
    k = jax.random.split(key, 7)

    x_low = jax.random.normal(k[0], (N, C, H, W), jnp.float32)
    x_high = jax.random.normal(k[1], (N, C, H // 2, W // 2), jnp.float32)

    # synthetic parameters (shapes from nn.Conv2d / nn.BatchNorm2d)
    conv_w = jax.random.normal(k[2], (C, C, 1, 1), jnp.float32) * 0.1
    gamma = 1.0 + 0.1 * jax.random.normal(k[3], (C,), jnp.float32)
    beta = 0.1 * jax.random.normal(k[4], (C,), jnp.float32)
    run_mean = 0.1 * jax.random.normal(k[5], (C,), jnp.float32)
    run_var = jnp.abs(jax.random.normal(k[6], (C,), jnp.float32)) + 0.5

    out = dsam_forward(x_low, x_high, conv_w, gamma, beta, run_mean, run_var)
    out = jax.block_until_ready(out)

    ref = _reference(x_low, x_high, conv_w, gamma, beta, run_mean, run_var)
    assert out.shape == (N, C, H, W)
    assert jnp.allclose(out, ref, atol=2e-3, rtol=2e-3), "mismatch vs reference"

    print("KERNEL_OK")
</pallas_src>

<mosaic_0001>
module attributes {stable_mosaic.version = 11 : i64} {
  func.func @_dsam_kernel(%arg0: i32, %arg1: i32, %arg2: memref<1x4x64xf32, #tpu.memory_space<vmem>>, %arg3: memref<1x4x256xf32, #tpu.memory_space<vmem>>, %arg4: memref<4x4xf32, #tpu.memory_space<vmem>>, %arg5: memref<4x1xf32, #tpu.memory_space<vmem>>, %arg6: memref<64x256xf32, #tpu.memory_space<vmem>>, %arg7: memref<1x4x256xf32, #tpu.memory_space<vmem>>) attributes {dimension_semantics = [#tpu.dimension_semantics<parallel>, #tpu.dimension_semantics<parallel>], iteration_bounds = array<i64: 2, 1>, scalar_prefetch = 0 : i64, scratch_operands = 0 : i64, tpu.core_type = #tpu.core_type<tc>, window_params = [{transform_indices = @transform_0, window_bounds = array<i64: 1, 4, 64>}, {transform_indices = @transform_1, window_bounds = array<i64: 1, 4, 256>}, {pipeline_mode = #tpu.pipeline_mode<synchronous>, transform_indices = @transform_2, window_bounds = array<i64: 4, 4>}, {pipeline_mode = #tpu.pipeline_mode<synchronous>, transform_indices = @transform_3, window_bounds = array<i64: 4, 1>}, {pipeline_mode = #tpu.pipeline_mode<synchronous>, transform_indices = @transform_4, window_bounds = array<i64: 64, 256>}, {transform_indices = @transform_5, window_bounds = array<i64: 1, 4, 256>}]} {
    %c0 = arith.constant 0 : index
    %c0_0 = arith.constant 0 : index
    %c0_1 = arith.constant 0 : index
    %0 = vector.load %arg2[%c0, %c0_0, %c0_1] : memref<1x4x64xf32, #tpu.memory_space<vmem>>, vector<1x4x64xf32>
    %1 = vector.shape_cast %0 : vector<1x4x64xf32> to vector<4x64xf32>
    %c0_2 = arith.constant 0 : index
    %c0_3 = arith.constant 0 : index
    %2 = vector.load %arg4[%c0_2, %c0_3] : memref<4x4xf32, #tpu.memory_space<vmem>>, vector<4x4xf32>
    %cst = arith.constant dense<0.000000e+00> : vector<4x64xf32>
    %3 = tpu.matmul %2, %1, %cst {dimension_numbers = #tpu.dot_dimension_numbers<[1], [0], [0], [1], [0, 0, 1, 1], [], []>} : vector<4x4xf32>, vector<4x64xf32>, vector<4x64xf32> -> vector<4x64xf32>
    %c0_4 = arith.constant 0 : index
    %c0_5 = arith.constant 0 : index
    %4 = vector.load %arg5[%c0_4, %c0_5] : memref<4x1xf32, #tpu.memory_space<vmem>>, vector<4x1xf32>
    %5 = vector.broadcast %4 : vector<4x1xf32> to vector<4x64xf32>
    %6 = arith.addf %3, %5 : vector<4x64xf32>
    %cst_6 = arith.constant 0.000000e+00 : f32
    %7 = vector.broadcast %cst_6 : f32 to vector<4x64xf32>
    %8 = arith.maximumf %6, %7 : vector<4x64xf32>
    %c0_7 = arith.constant 0 : index
    %c0_8 = arith.constant 0 : index
    %9 = vector.load %arg6[%c0_7, %c0_8] : memref<64x256xf32, #tpu.memory_space<vmem>>, vector<64x256xf32>
    %cst_9 = arith.constant dense<0.000000e+00> : vector<4x256xf32>
    %10 = tpu.matmul %8, %9, %cst_9 {dimension_numbers = #tpu.dot_dimension_numbers<[1], [0], [0], [1], [0, 0, 1, 1], [], []>} : vector<4x64xf32>, vector<64x256xf32>, vector<4x256xf32> -> vector<4x256xf32>
    %c0_10 = arith.constant 0 : index
    %c0_11 = arith.constant 0 : index
    %c0_12 = arith.constant 0 : index
    %11 = vector.load %arg3[%c0_10, %c0_11, %c0_12] : memref<1x4x256xf32, #tpu.memory_space<vmem>>, vector<1x4x256xf32>
    %12 = vector.shape_cast %11 : vector<1x4x256xf32> to vector<4x256xf32>
    %13 = arith.addf %12, %10 : vector<4x256xf32>
    %c0_13 = arith.constant 0 : index
    %c0_14 = arith.constant 0 : index
    %c0_15 = arith.constant 0 : index
    %14 = vector.load %arg7[%c0_13, %c0_14, %c0_15] : memref<1x4x256xf32, #tpu.memory_space<vmem>>, vector<1x4x256xf32>
    %15 = vector.shape_cast %14 : vector<1x4x256xf32> to vector<4x256xf32>
    %16 = vector.shape_cast %13 : vector<4x256xf32> to vector<1x4x256xf32>
    tpu.vector_store %arg7[%c0_13, %c0_14, %c0_15], %16 {strides = array<i32>} : memref<1x4x256xf32, #tpu.memory_space<vmem>>, vector<1x4x256xf32>,
    return
  }
  func.func @transform_0(%arg0: i32, %arg1: i32) -> (i32, i32, i32) {
    %c0_i32 = arith.constant 0 : i32
    %c0_i32_0 = arith.constant 0 : i32
    return %arg0, %c0_i32, %arg1 : i32, i32, i32
  }
  func.func @transform_1(%arg0: i32, %arg1: i32) -> (i32, i32, i32) {
    %c0_i32 = arith.constant 0 : i32
    %c0_i32_0 = arith.constant 0 : i32
    return %arg0, %c0_i32, %arg1 : i32, i32, i32
  }
  func.func @transform_2(%arg0: i32, %arg1: i32) -> (i32, i32) {
    %c0_i32 = arith.constant 0 : i32
    %c0_i32_0 = arith.constant 0 : i32
    %c0_i32_1 = arith.constant 0 : i32
    return %c0_i32, %c0_i32_0 : i32, i32
  }
  func.func @transform_3(%arg0: i32, %arg1: i32) -> (i32, i32) {
    %c0_i32 = arith.constant 0 : i32
    %c0_i32_0 = arith.constant 0 : i32
    %c0_i32_1 = arith.constant 0 : i32
    return %c0_i32, %c0_i32_0 : i32, i32
  }
  func.func @transform_4(%arg0: i32, %arg1: i32) -> (i32, i32) {
    %c0_i32 = arith.constant 0 : i32
    %c0_i32_0 = arith.constant 0 : i32
    %c0_i32_1 = arith.constant 0 : i32
    return %c0_i32, %c0_i32_0 : i32, i32
  }
  func.func @transform_5(%arg0: i32, %arg1: i32) -> (i32, i32, i32) {
    %c0_i32 = arith.constant 0 : i32
    %c0_i32_0 = arith.constant 0 : i32
    return %arg0, %c0_i32, %arg1 : i32, i32, i32
  }
}

</mosaic_0001>

<llo_original>
// kernel: tpu_custom_call.1
$region0: #{tpu_custom_call.1}
  #allocation0 [shape = 'u32[]', space=smem, size = 0x4, offset = 0x4, fixed_abs, tag = 'smem constant byte address 0x4 - core index']
  #allocation1 [shape = 'u32[144,128]{1,0:T(1,128)}', space=vmem, size = 0x12000, scoped, tag = 'internal scratch']
  %s0 = inlined_call_operand.hbm [shape: f32[2,4,64], index: 0, kind: input, shape index: {}]
  %s1 = inlined_call_operand.hbm [shape: f32[2,4,256], index: 1, kind: input, shape index: {}]
  %s2 = inlined_call_operand.vmem [shape: f32[4,4], index: 2, kind: input, shape index: {}]
  %s3 = inlined_call_operand.vmem [shape: f32[4,1], index: 3, kind: input, shape index: {}]
  %s4 = inlined_call_operand.hbm [shape: f32[64,256], index: 4, kind: input, shape index: {}]
  %s5 = inlined_call_operand.hbm [shape: f32[2,4,256], index: 5, kind: output, shape index: {}]
  %s6 = sld [smem:[#allocation0]]
  $region65: #{tpu_custom_call.1} parent=0
    _
  %s8 = ssub.s32 1, %s6
  %s9 = scalar_select 0, %s8, %s6
  $region1: #{tpu_custom_call.1} parent=0
    #allocation2 [shape = 'u8[4096]{0}', space=vmem, size = 0x1000, scoped, tag = 'input window, operand 0']
    #allocation3 [shape = 's32[2]{0}', space=sflag, size = 0x8, scoped, tag = 'scoped memory for tpu_custom_call.1']
    #allocation4 [shape = 's32[2]{0}', space=sflag, size = 0x8, scoped, tag = 'scoped memory for tpu_custom_call.1']
    #allocation5 [shape = 'u8[8192]{0}', space=vmem, size = 0x2000, scoped, tag = 'input window, operand 1']
    #allocation6 [shape = 's32[2]{0}', space=sflag, size = 0x8, scoped, tag = 'scoped memory for tpu_custom_call.1']
    #allocation7 [shape = 'u8[65536]{0}', space=vmem, size = 0x10000, scoped, tag = 'input window, operand 4, single buffered']
    #allocation8 [shape = 'u8[8192]{0}', space=vmem, size = 0x2000, scoped, tag = 'output window, operand 0']
    %10 = vsyncpa [#allocation3], 0
    %s11 = scalar_lea.sflag [#allocation3], 1
    %12 = vsyncpa %s11, 0
    %13 = vsyncpa [#allocation6], 0
    %s14 = scalar_lea.sflag [#allocation6], 1
    %15 = vsyncpa %s14, 0
    %16 = vsyncpa [#allocation4], 0
    %s17 = scalar_lea.sflag [#allocation4], 1
    %18 = vsyncpa %s17, 0
    loop: start=0, step=1, limit=4
    $region2: #{tpu_custom_call.1} parent=1 // loop_pre_header
      _
    $region3: #{tpu_custom_call.1} parent=1 // loop_header
      %s20 = sphi 0, %s24
      %p21 = scmp.ge.s32.totalorder %s20, 4
      %s27 = sphi 0, %s39
      %s28 = sphi 0, %s35
      %s29 = sphi 0, %s27
      %s30 = sphi 0, %s28
      %s31 = sphi 0, %s29
      %s32 = sphi 0, %s30
      %s44 = sphi 0, %s46
      %s47 = sphi 0, %s44
      %s48 = sphi 0, %s47
      %s64 = sphi 0, %s48
      %s72 = sphi 0, %s74
      %s75 = sphi 0, %s72
      %s76 = sphi 0, %s75
      %s92 = sphi 0, %s76
      %s96 = sphi 0, %s96
      %s98 = sphi 0, %s96
      %s99 = sphi 0, %s98
      %s113 = sphi 0, %s99
      %s117 = sphi 0, %s117
      %s119 = sphi 0, %s117
      %s120 = sphi 0, %s119
      %s134 = sphi 0, %s120
      %s138 = sphi 0, %s138
      %s140 = sphi 0, %s138
      %s141 = sphi 0, %s140
      %s155 = sphi 0, %s141
      %s163 = sphi 0, %s165
      %s166 = sphi 0, %s163
      %s167 = sphi 0, %s166
      %s183 = sphi 0, %s167
    $region4: #{tpu_custom_call.1} parent=1 // loop_header_branch
      %23 = sbr.rel (%p21) target = $region8
    $region5: #{tpu_custom_call.1} parent=1 // loop_body
      %s25 = ssub.s32 %s20, 1
      %s26 = ssub.s32 %s20, 2
      %s33 = sadd.s32 1, %s28
      %p34 = scmp.ge.s32.totalorder %s33, 1
      %s35 = scalar_select %p34, 0, %s33
      %s36 = sadd.s32 1, %s27
      %s37 = scalar_select %p34, %s36, %s27
      %p38 = scmp.ge.s32.totalorder %s37, 2
      %s39 = scalar_select %p38, 0, %s37
      %s40 = ssub.s32 %s27, %s39
      %s41 = ssub.s32 %s28, %s35
      %s42 = sor.u32 %s40, %s41
      %p43 = scmp.eq.s32.totalorder %s42, 0
      %s45 = sadd.s32 %s44, 1
      %s46 = scalar_select %p43, %s44, %s45
      %p49 = pneg %p43
      %p50 = scmp.eq.s32.totalorder %s20, 1
      %p51 = por %p49, %p50
      %p52 = scmp.ne.s32.totalorder %s44, %s47
      %p53 = scmp.eq.s32.totalorder %s20, 0
      %p54 = por %p52, %p53
      %p55 = scmp.ne.s32.totalorder %s44, %s47
      %p56 = scmp.eq.s32.totalorder %s25, 1
      %p57 = por %p55, %p56
      %p58 = scmp.ne.s32.totalorder %s47, %s48
      %p59 = scmp.eq.s32.totalorder %s25, 0
      %p60 = por %p58, %p59
      %p61 = scmp.ne.s32.totalorder %s47, %s48
      %p62 = scmp.eq.s32.totalorder %s26, 1
      %p63 = por %p61, %p62
      %p65 = scmp.ne.s32.totalorder %s48, %s64
      %p66 = scmp.eq.s32.totalorder %s26, 0
      %p67 = por %p65, %p66
      %s68 = ssub.s32 %s27, %s39
      %s69 = ssub.s32 %s28, %s35
      %s70 = sor.u32 %s68, %s69
      %p71 = scmp.eq.s32.totalorder %s70, 0
      %s73 = sadd.s32 %s72, 1
      %s74 = scalar_select %p71, %s72, %s73
      %p77 = pneg %p71
      %p78 = scmp.eq.s32.totalorder %s20, 1
      %p79 = por %p77, %p78
      %p80 = scmp.ne.s32.totalorder %s72, %s75
      %p81 = scmp.eq.s32.totalorder %s20, 0
      %p82 = por %p80, %p81
      %p83 = scmp.ne.s32.totalorder %s72, %s75
      %p84 = scmp.eq.s32.totalorder %s25, 1
      %p85 = por %p83, %p84
      %p86 = scmp.ne.s32.totalorder %s75, %s76
      %p87 = scmp.eq.s32.totalorder %s25, 0
      %p88 = por %p86, %p87
      %p89 = scmp.ne.s32.totalorder %s75, %s76
      %p90 = scmp.eq.s32.totalorder %s26, 1
      %p91 = por %p89, %p90
      %p93 = scmp.ne.s32.totalorder %s76, %s92
      %p94 = scmp.eq.s32.totalorder %s26, 0
      %p95 = por %p93, %p94
      %s97 = sadd.s32 %s96, 1
      %p100 = scmp.eq.s32.totalorder %s20, 1
      %p101 = scmp.ne.s32.totalorder %s96, %s98
      %p102 = scmp.eq.s32.totalorder %s20, 0
      %p103 = por %p101, %p102
      %p104 = scmp.ne.s32.totalorder %s96, %s98
      %p105 = scmp.eq.s32.totalorder %s25, 1
      %p106 = por %p104, %p105
      %p107 = scmp.ne.s32.totalorder %s98, %s99
      %p108 = scmp.eq.s32.totalorder %s25, 0
      %p109 = por %p107, %p108
      %p110 = scmp.ne.s32.totalorder %s98, %s99
      %p111 = scmp.eq.s32.totalorder %s26, 1
      %p112 = por %p110, %p111
      %p114 = scmp.ne.s32.totalorder %s99, %s113
      %p115 = scmp.eq.s32.totalorder %s26, 0
      %p116 = por %p114, %p115
      %s118 = sadd.s32 %s117, 1
      %p121 = scmp.eq.s32.totalorder %s20, 1
      %p122 = scmp.ne.s32.totalorder %s117, %s119
      %p123 = scmp.eq.s32.totalorder %s20, 0
      %p124 = por %p122, %p123
      %p125 = scmp.ne.s32.totalorder %s117, %s119
      %p126 = scmp.eq.s32.totalorder %s25, 1
      %p127 = por %p125, %p126
      %p128 = scmp.ne.s32.totalorder %s119, %s120
      %p129 = scmp.eq.s32.totalorder %s25, 0
      %p130 = por %p128, %p129
      %p131 = scmp.ne.s32.totalorder %s119, %s120
      %p132 = scmp.eq.s32.totalorder %s26, 1
      %p133 = por %p131, %p132
      %p135 = scmp.ne.s32.totalorder %s120, %s134
      %p136 = scmp.eq.s32.totalorder %s26, 0
      %p137 = por %p135, %p136
      %s139 = sadd.s32 %s138, 1
      %p142 = scmp.eq.s32.totalorder %s20, 1
      %p143 = scmp.ne.s32.totalorder %s138, %s140
      %p144 = scmp.eq.s32.totalorder %s20, 0
      %p145 = por %p143, %p144
      %p146 = scmp.ne.s32.totalorder %s138, %s140
      %p147 = scmp.eq.s32.totalorder %s25, 1
      %p148 = por %p146, %p147
      %p149 = scmp.ne.s32.totalorder %s140, %s141
      %p150 = scmp.eq.s32.totalorder %s25, 0
      %p151 = por %p149, %p150
      %p152 = scmp.ne.s32.totalorder %s140, %s141
      %p153 = scmp.eq.s32.totalorder %s26, 1
      %p154 = por %p152, %p153
      %p156 = scmp.ne.s32.totalorder %s141, %s155
      %p157 = scmp.eq.s32.totalorder %s26, 0
      %p158 = por %p156, %p157
      %s159 = ssub.s32 %s27, %s39
      %s160 = ssub.s32 %s28, %s35
      %s161 = sor.u32 %s159, %s160
      %p162 = scmp.eq.s32.totalorder %s161, 0
      %s164 = sadd.s32 %s163, 1
      %s165 = scalar_select %p162, %s163, %s164
      %p168 = pneg %p162
      %p169 = scmp.eq.s32.totalorder %s20, 1
      %p170 = por %p168, %p169
      %p171 = scmp.ne.s32.totalorder %s163, %s166
      %p172 = scmp.eq.s32.totalorder %s20, 0
      %p173 = por %p171, %p172
      %p174 = scmp.ne.s32.totalorder %s163, %s166
      %p175 = scmp.eq.s32.totalorder %s25, 1
      %p176 = por %p174, %p175
      %p177 = scmp.ne.s32.totalorder %s166, %s167
      %p178 = scmp.eq.s32.totalorder %s25, 0
      %p179 = por %p177, %p178
      %p180 = scmp.ne.s32.totalorder %s166, %s167
      %p181 = scmp.eq.s32.totalorder %s26, 1
      %p182 = por %p180, %p181
      %p184 = scmp.ne.s32.totalorder %s167, %s183
      %p185 = scmp.eq.s32.totalorder %s26, 0
      %p186 = por %p184, %p185
      %p187 = scmp.le.s32.totalorder 1, %s20
      %p188 = scmp.lt.s32.totalorder %s20, 3
      %p189 = pnand %p187, %p188
      %p190 = pneg %p189
      // Predicated region
      $region9: #{tpu_custom_call.1} parent=5 // pred_check
        _
      $region10: #{tpu_custom_call.1} parent=5 // pred_check_branch
        %192 = sbr.rel (%p189) target = $region12
      $region11: #{tpu_custom_call.1} parent=5 // pred_region
        %s193 = ssub.s32 %s20, 1
        // Predicated region
        $region13: #{tpu_custom_call.1} parent=11 // pred_check
          %p194 = pneg %p109
        $region14: #{tpu_custom_call.1} parent=11 // pred_check_branch
          %196 = sbr.rel (%p194) target = $region16
        $region15: #{tpu_custom_call.1} parent=11 // pred_region
          _
        $region16: #{tpu_custom_call.1} parent=11 // pred_fallthru
          _
        // Predicated region
        $region17: #{tpu_custom_call.1} parent=11 // pred_check
          %p197 = pneg %p130
        $region18: #{tpu_custom_call.1} parent=11 // pred_check_branch
          %199 = sbr.rel (%p197) target = $region20
        $region19: #{tpu_custom_call.1} parent=11 // pred_region
          _
        $region20: #{tpu_custom_call.1} parent=11 // pred_fallthru
          _
        // Predicated region
        $region21: #{tpu_custom_call.1} parent=11 // pred_check
          %p200 = pneg %p151
        $region22: #{tpu_custom_call.1} parent=11 // pred_check_branch
          %202 = sbr.rel (%p200) target = $region24
        $region23: #{tpu_custom_call.1} parent=11 // pred_region
          %s204 = ssub.s32 2048, 2048
          %205 = vsyncadd [#allocation6], %s204
          %s206 = sshll.u32 [#allocation7], 4
          %s207 = int_to_ptr.vmem [resolvable:$true] %s206
          %212 = dma.hbm_to_vmem [thread:$0]  %s4, 2048, %s207, [#allocation6], 256, 256, 16
        $region24: #{tpu_custom_call.1} parent=11 // pred_fallthru
          _
      $region12: #{tpu_custom_call.1} parent=5 // pred_fallthru
        _
      %p213 = scmp.lt.s32.totalorder %s20, 2
      // Predicated region
      $region25: #{tpu_custom_call.1} parent=5 // pred_check
        %p214 = pneg %p213
      $region26: #{tpu_custom_call.1} parent=5 // pred_check_branch
        %216 = sbr.rel (%p214) target = $region28
      $region27: #{tpu_custom_call.1} parent=5 // pred_region
        // Predicated region
        $region29: #{tpu_custom_call.1} parent=27 // pred_check
          %p217 = pneg %p54
        $region30: #{tpu_custom_call.1} parent=27 // pred_check_branch
          %219 = sbr.rel (%p217) target = $region32
        $region31: #{tpu_custom_call.1} parent=27 // pred_region
          %s220 = sand.u32 %s44, 1
          %s221 = scalar_lea.sflag [#allocation3], %s220
          %s222 = sand.u32 %s44, 1
          %s223 = smul.addr %s222, 4
          %s224 = scalar_lea.vmem [#allocation2], %s223
          %s226 = ssub.s32 64, 64
          %227 = vsyncadd %s221, %s226
          %s228 = sadd.s32 %s28, %s27
          %s229 = smul.addr %s228, 64
          %s230 = scalar_lea.hbm %s0, %s229
          %s232 = sshll.u32 %s224, 4
          %s233 = int_to_ptr.vmem [resolvable:$true] %s232
          %235 = dma.hbm_to_vmem [thread:$0]  %s230, 64, %s233, %s221
        $region32: #{tpu_custom_call.1} parent=27 // pred_fallthru
          _
        // Predicated region
        $region33: #{tpu_custom_call.1} parent=27 // pred_check
          %p236 = pneg %p82
        $region34: #{tpu_custom_call.1} parent=27 // pred_check_branch
          %238 = sbr.rel (%p236) target = $region36
        $region35: #{tpu_custom_call.1} parent=27 // pred_region
          %s239 = sand.u32 %s20, 1
          %s240 = scalar_lea.sflag [#allocation6], %s239
          %s241 = sand.u32 %s72, 1
          %s242 = smul.addr %s241, 8
          %s243 = scalar_lea.vmem [#allocation5], %s242
          %s244 = smul.u32 2, %s28
          %s246 = ssub.s32 128, 128
          %247 = vsyncadd %s240, %s246
          %s248 = smul.addr %s27, 2
          %s249 = sadd.s32 %s244, %s248
          %s250 = smul.addr %s249, 64
          %s251 = scalar_lea.hbm %s1, %s250
          %s253 = sshll.u32 %s243, 4
          %s254 = int_to_ptr.vmem [resolvable:$true] %s253
          %256 = dma.hbm_to_vmem [thread:$0]  %s251, 128, %s254, %s240
        $region36: #{tpu_custom_call.1} parent=27 // pred_fallthru
          _
      $region28: #{tpu_custom_call.1} parent=5 // pred_fallthru
        _
      %p257 = scmp.le.s32.totalorder 1, %s20
      %p258 = scmp.lt.s32.totalorder %s20, 3
      %p259 = pnand %p257, %p258
      %p260 = pneg %p259
      // Predicated region
      $region37: #{tpu_custom_call.1} parent=5 // pred_check
        _
      $region38: #{tpu_custom_call.1} parent=5 // pred_check_branch
        %262 = sbr.rel (%p259) target = $region40
      $region39: #{tpu_custom_call.1} parent=5 // pred_region
        %s263 = ssub.s32 %s20, 1
        %s264 = sand.u32 %s47, 1
        %s265 = scalar_lea.sflag [#allocation3], %s264
        %s266 = sand.u32 %s47, 1
        %s267 = smul.addr %s266, 4
        %s268 = scalar_lea.vmem [#allocation2], %s267
        // Predicated region
        $region41: #{tpu_custom_call.1} parent=39 // pred_check
          %p269 = pneg %p60
        $region42: #{tpu_custom_call.1} parent=39 // pred_check_branch
          %271 = sbr.rel (%p269) target = $region44
        $region43: #{tpu_custom_call.1} parent=39 // pred_region
          %272 = dma.done %s265, 64
        $region44: #{tpu_custom_call.1} parent=39 // pred_fallthru
          _
        %s273 = sand.u32 %s25, 1
        %s274 = scalar_lea.sflag [#allocation6], %s273
        %s275 = sand.u32 %s75, 1
        %s276 = smul.addr %s275, 8
        %s277 = scalar_lea.vmem [#allocation5], %s276
        // Predicated region
        $region45: #{tpu_custom_call.1} parent=39 // pred_check
          %p278 = pneg %p88
        $region46: #{tpu_custom_call.1} parent=39 // pred_check_branch
          %280 = sbr.rel (%p278) target = $region48
        $region47: #{tpu_custom_call.1} parent=39 // pred_region
          %281 = dma.done %s274, 128
        $region48: #{tpu_custom_call.1} parent=39 // pred_fallthru
          _
        // Predicated region
        $region49: #{tpu_custom_call.1} parent=39 // pred_check
          %p282 = pneg %p151
        $region50: #{tpu_custom_call.1} parent=39 // pred_check_branch
          %284 = sbr.rel (%p282) target = $region52
        $region51: #{tpu_custom_call.1} parent=39 // pred_region
          %285 = dma.done [#allocation6], 2048
        $region52: #{tpu_custom_call.1} parent=39 // pred_fallthru
          _
        %s286 = sand.u32 %s47, 1
        %s287 = scalar_lea.sflag [#allocation3], %s286
        %s288 = sand.u32 %s47, 1
        %s289 = smul.addr %s288, 4
        %s290 = scalar_lea.vmem [#allocation2], %s289
        %p291 = pneg %p60
        %p292 = pneg %p57
        %s293 = sand.u32 %s25, 1
        %s294 = scalar_lea.sflag [#allocation6], %s293
        %s295 = sand.u32 %s75, 1
        %s296 = smul.addr %s295, 8
        %s297 = scalar_lea.vmem [#allocation5], %s296
        %p298 = pneg %p88
        %p299 = pneg %p85
        %p300 = pneg %p109
        %p301 = pneg %p106
        %p302 = pneg %p130
        %p303 = pneg %p127
        %p304 = pneg %p151
        %p305 = pneg %p148
        %p306 = pneg %p179
        %p307 = pneg %p176
        %s308 = sand.u32 %s166, 1
        %s309 = scalar_lea.sflag [#allocation4], %s308
        %s310 = sand.u32 %s166, 1
        %s311 = smul.addr %s310, 8
        %s312 = scalar_lea.vmem [#allocation8], %s311
        %s313 = smul.u32 2, %s30
        %s314 = smul.u32 2, %s30
        %v315 = vld [vmem:[%s268] sm:$0xf]
        %v316 = vld [vmem:[%s2] sm:$0xf]
        %v317 = vld [vmem:[%s3] sm:$0xf]
        %319 = vset.pattern.permute.xlu0 0
        %320 = vperm.xlu0 %319, %v317
        %v321 = vpop.permute.xlu0 %320
        %vm323 = vcmask 31744
        %v325 = vsel %vm323, %v316, 0
        %vm327 = vcmask 1043456
        %v329 = vsel %vm327, %v315, 0
        %331 = vmatprep.subr.mxu0 0.0
        %332 = vmatpush1.msra.mxu0 %v329
        %333 = vmatprep.subr.mxu0 0.0
        %334 = vmatpush1.msra.mxu0 0.0
        %335 = vmatprep.subr.mxu0 0.0
        %336 = vmatpush1.msra.mxu0 0.0
        %337 = vmatprep.subr.mxu0 0.0
        %338 = vmatpush1.msra.mxu0 0.0
        %339 = vmatprep.subr.mxu0 0.0
        %340 = vmatpush1.msra.mxu0 0.0
        %341 = vmatprep.subr.mxu0 0.0
        %342 = vmatpush1.msra.mxu0 0.0
        %343 = vmatprep.subr.mxu0 0.0
        %344 = vmatpush1.msra.mxu0 0.0
        %345 = vmatprep.subr.mxu0 0.0
        %346 = vmatpush1.msra.mxu0 0.0
        %347 = vmatprep.subr.mxu0 0.0
        %348 = vmatpush1.msra.mxu0 0.0
        %349 = vmatprep.subr.mxu0 0.0
        %350 = vmatpush1.msra.mxu0 0.0
        %351 = vmatprep.subr.mxu0 0.0
        %352 = vmatpush1.msra.mxu0 0.0
        %353 = vmatprep.subr.mxu0 0.0
        %354 = vmatpush1.msra.mxu0 0.0
        %355 = vmatprep.subr.mxu0 0.0
        %356 = vmatpush1.msra.mxu0 0.0
        %357 = vmatprep.subr.mxu0 0.0
        %358 = vmatpush1.msra.mxu0 0.0
        %359 = vmatprep.subr.mxu0 0.0
        %360 = vmatpush1.msra.mxu0 0.0
        %361 = vmatprep.subr.mxu0 0.0
        %362 = vmatpush1.msra.mxu0 0.0
        %363 = vmatprep.subr.mxu0 0.0
        %364 = vmatpush1.msra.mxu0 0.0
        %365 = vmatprep.subr.mxu0 0.0
        %366 = vmatpush1.msra.mxu0 0.0
        %367 = vmatprep.subr.mxu0 0.0
        %368 = vmatpush1.msra.mxu0 0.0
        %369 = vmatprep.subr.mxu0 0.0
        %370 = vmatpush1.msra.mxu0 0.0
        %371 = vmatprep.subr.mxu0 0.0
        %372 = vmatpush1.msra.mxu0 0.0
        %373 = vmatprep.subr.mxu0 0.0
        %374 = vmatpush1.msra.mxu0 0.0
        %375 = vmatprep.subr.mxu0 0.0
        %376 = vmatpush1.msra.mxu0 0.0
        %377 = vmatprep.subr.mxu0 0.0
        %378 = vmatpush1.msra.mxu0 0.0
        %379 = vmatprep.subr.mxu0 0.0
        %380 = vmatpush1.msra.mxu0 0.0
        %381 = vmatprep.subr.mxu0 0.0
        %382 = vmatpush1.msra.mxu0 0.0
        %383 = vmatprep.subr.mxu0 0.0
        %384 = vmatpush1.msra.mxu0 0.0
        %385 = vmatprep.subr.mxu0 0.0
        %386 = vmatpush1.msra.mxu0 0.0
        %387 = vmatprep.subr.mxu0 0.0
        %388 = vmatpush1.msra.mxu0 0.0
        %389 = vmatprep.subr.mxu0 0.0
        %390 = vmatpush1.msra.mxu0 0.0
        %391 = vmatprep.subr.mxu0 0.0
        %392 = vmatpush1.msra.mxu0 0.0
        %393 = vmatprep.subr.mxu0 0.0
        %394 = vmatpush1.msra.mxu0 0.0
        %395 = vmatprep.mubr.f32.mxu0 0.0
        %396 = vmatmul.mubr.f32.gmra.mrb[0].mxu0 %v325
        %v397 = vpop.f32.mrb[0].mxu0
        %v398 = vadd.f32 %v321, %v397
        %v399 = vpop.f32.mrb[0].mxu0
        %400 = vdwg.mxu0
        %v401 = vmax.f32 %v398, 0.0
        %v402 = vld [vmem:[#allocation7] sm:$0xff]
        %v403 = vld [vmem:[#allocation7 + $0x8] sm:$0xff]
        %v404 = vld [vmem:[#allocation7 + $0x10] sm:$0xff]
        %v405 = vld [vmem:[#allocation7 + $0x18] sm:$0xff]
        %v406 = vld [vmem:[#allocation7 + $0x20] sm:$0xff]
        %v407 = vld [vmem:[#allocation7 + $0x28] sm:$0xff]
        %v408 = vld [vmem:[#allocation7 + $0x30] sm:$0xff]
        %v409 = vld [vmem:[#allocation7 + $0x38] sm:$0xff]
        %v410 = vld [vmem:[#allocation7 + $0x40] sm:$0xff]
        %v411 = vld [vmem:[#allocation7 + $0x48] sm:$0xff]
        %v412 = vld [vmem:[#allocation7 + $0x50] sm:$0xff]
        %v413 = vld [vmem:[#allocation7 + $0x58] sm:$0xff]
        %v414 = vld [vmem:[#allocation7 + $0x60] sm:$0xff]
        %v415 = vld [vmem:[#allocation7 + $0x68] sm:$0xff]
        %v416 = vld [vmem:[#allocation7 + $0x70] sm:$0xff]
        %v417 = vld [vmem:[#allocation7 + $0x78] sm:$0xff]
        %vm418 = vcmask 523264
        %v420 = vsel %vm418, %v401, 0
        %422 = vmatprep.subr.mxu0 %v403
        %423 = vmatpush1.msra.mxu0 %v402
        %424 = vmatprep.subr.mxu0 %v405
        %425 = vmatpush1.msra.mxu0 %v404
        %426 = vmatprep.subr.mxu0 %v407
        %427 = vmatpush1.msra.mxu0 %v406
        %428 = vmatprep.subr.mxu0 %v409
        %429 = vmatpush1.msra.mxu0 %v408
        %430 = vmatprep.subr.mxu0 %v411
        %431 = vmatpush1.msra.mxu0 %v410
        %432 = vmatprep.subr.mxu0 %v413
        %433 = vmatpush1.msra.mxu0 %v412
        %434 = vmatprep.subr.mxu0 %v415
        %435 = vmatpush1.msra.mxu0 %v414
        %436 = vmatprep.subr.mxu0 %v417
        %437 = vmatpush1.msra.mxu0 %v416
        %438 = vmatprep.subr.mxu0 0.0
        %439 = vmatpush1.msra.mxu0 0.0
        %440 = vmatprep.subr.mxu0 0.0
        %441 = vmatpush1.msra.mxu0 0.0
        %442 = vmatprep.subr.mxu0 0.0
        %443 = vmatpush1.msra.mxu0 0.0
        %444 = vmatprep.subr.mxu0 0.0
        %445 = vmatpush1.msra.mxu0 0.0
        %446 = vmatprep.subr.mxu0 0.0
        %447 = vmatpush1.msra.mxu0 0.0
        %448 = vmatprep.subr.mxu0 0.0
        %449 = vmatpush1.msra.mxu0 0.0
        %450 = vmatprep.subr.mxu0 0.0
        %451 = vmatpush1.msra.mxu0 0.0
        %452 = vmatprep.subr.mxu0 0.0
        %453 = vmatpush1.msra.mxu0 0.0
        %454 = vmatprep.subr.mxu0 0.0
        %455 = vmatpush1.msra.mxu0 0.0
        %456 = vmatprep.subr.mxu0 0.0
        %457 = vmatpush1.msra.mxu0 0.0
        %458 = vmatprep.subr.mxu0 0.0
        %459 = vmatpush1.msra.mxu0 0.0
        %460 = vmatprep.subr.mxu0 0.0
        %461 = vmatpush1.msra.mxu0 0.0
        %462 = vmatprep.subr.mxu0 0.0
        %463 = vmatpush1.msra.mxu0 0.0
        %464 = vmatprep.subr.mxu0 0.0
        %465 = vmatpush1.msra.mxu0 0.0
        %466 = vmatprep.subr.mxu0 0.0
        %467 = vmatpush1.msra.mxu0 0.0
        %468 = vmatprep.subr.mxu0 0.0
        %469 = vmatpush1.msra.mxu0 0.0
        %470 = vmatprep.subr.mxu0 0.0
        %471 = vmatpush1.msra.mxu0 0.0
        %472 = vmatprep.subr.mxu0 0.0
        %473 = vmatpush1.msra.mxu0 0.0
        %474 = vmatprep.subr.mxu0 0.0
        %475 = vmatpush1.msra.mxu0 0.0
        %476 = vmatprep.subr.mxu0 0.0
        %477 = vmatpush1.msra.mxu0 0.0
        %478 = vmatprep.subr.mxu0 0.0
        %479 = vmatpush1.msra.mxu0 0.0
        %480 = vmatprep.subr.mxu0 0.0
        %481 = vmatpush1.msra.mxu0 0.0
        %482 = vmatprep.subr.mxu0 0.0
        %483 = vmatpush1.msra.mxu0 0.0
        %484 = vmatprep.subr.mxu0 0.0
        %485 = vmatpush1.msra.mxu0 0.0
        %486 = vmatprep.mubr.f32.mxu0 0.0
        %487 = vmatmul.mubr.f32.gmra.mrb[0].mxu0 %v420
        %v488 = vpop.f32.mrb[0].mxu0
        %v489 = vadd.f32 0.0, %v488
        %v490 = vpop.f32.mrb[0].mxu0
        %v491 = vadd.f32 0.0, %v490
        %492 = vdwg.mxu0
        %v493 = vld [vmem:[%s277] sm:$0xff]
        %v496 = vcombine.low %v489, %v491
        %v498 = vadd.f32 %v493, %v496
        %499 = vst [vmem:[%s312] sm:$0xff] %v498
        %s500 = sand.u32 %s166, 1
        %s501 = scalar_lea.sflag [#allocation4], %s500
        %s502 = sand.u32 %s166, 1
        %s503 = smul.addr %s502, 8
        %s504 = scalar_lea.vmem [#allocation8], %s503
        // Predicated region
        $region53: #{tpu_custom_call.1} parent=39 // pred_check
          %p505 = pneg %p176
        $region54: #{tpu_custom_call.1} parent=39 // pred_check_branch
          %507 = sbr.rel (%p505) target = $region56
        $region55: #{tpu_custom_call.1} parent=39 // pred_region
          %s508 = smul.u32 2, %s30
          %s510 = ssub.s32 128, 128
          %511 = vsyncadd %s501, %s510
          %s512 = smul.addr %s29, 2
          %s513 = sadd.s32 %s508, %s512
          %s514 = smul.addr %s513, 64
          %s515 = scalar_lea.hbm %s5, %s514
          %s517 = sshll.u32 %s504, 4
          %s518 = int_to_ptr.vmem [resolvable:$true] %s517
          %520 = dma.vmem_to_hbm [thread:$0]  %s518, 128, %s515, %s501
        $region56: #{tpu_custom_call.1} parent=39 // pred_fallthru
          _
      $region40: #{tpu_custom_call.1} parent=5 // pred_fallthru
        _
      %p521 = scmp.le.s32.totalorder 2, %s20
      // Predicated region
      $region57: #{tpu_custom_call.1} parent=5 // pred_check
        %p522 = pneg %p521
      $region58: #{tpu_custom_call.1} parent=5 // pred_check_branch
        %524 = sbr.rel (%p522) target = $region60
      $region59: #{tpu_custom_call.1} parent=5 // pred_region
        %s525 = ssub.s32 %s20, 2
        // Predicated region
        $region61: #{tpu_custom_call.1} parent=59 // pred_check
          %p526 = pneg %p182
        $region62: #{tpu_custom_call.1} parent=59 // pred_check_branch
          %528 = sbr.rel (%p526) target = $region64
        $region63: #{tpu_custom_call.1} parent=59 // pred_region
          %s529 = sand.u32 %s167, 1
          %s530 = scalar_lea.sflag [#allocation4], %s529
          %s531 = sand.u32 %s167, 1
          %s532 = smul.addr %s531, 8
          %s533 = scalar_lea.vmem [#allocation8], %s532
          %534 = dma.done %s530, 128
        $region64: #{tpu_custom_call.1} parent=59 // pred_fallthru
          _
      $region60: #{tpu_custom_call.1} parent=5 // pred_fallthru
        _
    $region6: #{tpu_custom_call.1} parent=1 // loop_footer
      %s24 = sadd.s32 1, %s20
    $region7: #{tpu_custom_call.1} parent=1 // loop_footer_branch
      %19 = sbr.rel target = $region3
    $region8: #{tpu_custom_call.1} parent=1 // loop_exit
      _
    %535 = vsyncpa [#allocation3], 1
    %s536 = scalar_lea.sflag [#allocation3], 1
    %537 = vsyncpa %s536, 1
    %538 = vsyncpa [#allocation6], 1
    %s539 = scalar_lea.sflag [#allocation6], 1
    %540 = vsyncpa %s539, 1
    %541 = vsyncpa [#allocation4], 1
    %s542 = scalar_lea.sflag [#allocation4], 1
    %543 = vsyncpa %s542, 1

</llo_original>
